<compile_context>
chip_gen: v7x
topology: tpu7x:2x2x1
jax: 0.10.0
libtpu: 0.0.40
codegen_flags: <defaults>
</compile_context>

<pallas_src>
import math
import numpy as np
import jax
import jax.numpy as jnp
from jax.experimental import pallas as pl
from jax.experimental.pallas import tpu as pltpu

_LANE = 128


def make_anchor_offsets(stride,
                        sizes=(4.0, 4.0 * math.pow(2, 1 / 3), 4.0 * math.pow(2, 2 / 3)),
                        aspect_ratios=(0.5, 1.0, 2.0)):
    """Deterministic precomputation from Anchors.__init__ -> (A, 4) float32."""
    A = len(sizes) * len(aspect_ratios)
    offs = np.zeros((A, 4), dtype=np.float32)
    cnt = 0
    for size in sizes:
        for ar in aspect_ratios:
            w = size * stride / math.sqrt(ar)
            h = ar * w
            offs[cnt] = [-w / 2.0, -h / 2.0, w / 2.0, h / 2.0]
            cnt += 1
    return offs


def _round_up(x, m):
    return ((x + m - 1) // m) * m


def _pick_hw_tile(HW, max_tile=32768, min_tile=512):
    """Lane tile (multiple of 128) + grid size; a cdiv grid handles ragged tails.

    - Tiny levels (<= min_tile pixels): one full-extent block (always legal).
    - Otherwise: >= 2 tiles (v7x dual-TC sharding), each a multiple of 128 lanes,
      capped at max_tile (keeps 2x double-buffered output < v5e's 16 MiB scoped
      VMEM and well under v7x's 64 MiB physical VMEM).
    """
    if HW <= min_tile:
        return HW, 1
    thw = min(max_tile, _round_up(pl.cdiv(HW, 2), _LANE))
    thw = max(thw, _LANE)
    return thw, pl.cdiv(HW, thw)


def anchors_forward(x, stride):
    """Pallas equivalent of Anchors.forward: x (B,C,H,W) -> anchors (B, A*4, H, W) f32."""
    B, _, H, W = x.shape
    offs = make_anchor_offsets(stride)            # (A, 4)
    A = offs.shape[0]
    A4 = A * 4
    HW = H * W
    thw, num_tiles = _pick_hw_tile(HW)

    offs_flat = jnp.asarray(offs.reshape(A4, 1))  # (A*4, 1) float32

    # Exact per-tile (row0, rem0) of the first pixel of each tile, computed with
    # integer math at trace time; delivered to the kernel via scalar prefetch.
    bases = np.arange(num_tiles, dtype=np.int64) * thw
    row0_tab = jnp.asarray((bases // W).astype(np.int32))   # (num_tiles,)
    rem0_tab = jnp.asarray((bases % W).astype(np.int32))    # (num_tiles,)

    stride_f = float(stride)
    w_is_pow2 = (W & (W - 1)) == 0
    w_shift = W.bit_length() - 1
    inv_w = 1.0 / float(W)

    def kernel(row0_ref, rem0_ref, off_ref, o_ref):
        # row0_ref/rem0_ref: (num_tiles,) int32 in SMEM (scalar prefetch)
        # off_ref: (A4, 1) VMEM,  o_ref: (A4, thw) VMEM (one lane-dense HW tile)
        t = pl.program_id(0)
        row0 = row0_ref[t]                                       # scalar int32
        rem0 = rem0_ref[t]                                       # scalar int32
        # local lane index within the tile; v = rem0 + l stays < W + thw, so the
        # float floor trick below is exact for any realistic W.
        l = jax.lax.broadcasted_iota(jnp.int32, (1, thw), 1)
        v = l + rem0
        if w_is_pow2:
            row_f = ((v >> w_shift) + row0).astype(jnp.float32)  # h index
            col_f = (v & (W - 1)).astype(jnp.float32)            # w index
        else:
            v_f = v.astype(jnp.float32)
            row_loc = jnp.floor((v_f + 0.5) * jnp.float32(inv_w))
            col_f = v_f - row_loc * jnp.float32(W)
            row_f = row_loc + row0.astype(jnp.float32)
        x_base = col_f * stride_f                                # (1, thw)
        y_base = row_f * stride_f                                # (1, thw)
        # channels within each anchor group are ordered (x1, y1, x2, y2):
        # even channels use the x (col) center, odd channels the y (row) center.
        ch = jax.lax.broadcasted_iota(jnp.int32, (A4, 1), 0)
        is_y = (ch & 1).astype(jnp.float32)                      # (A4, 1)
        base = x_base + is_y * (y_base - x_base)                 # (A4, thw)
        o_ref[...] = base + off_ref[...]                         # + per-channel offset

    cost = pl.CostEstimate(
        flops=6 * A4 * HW,
        transcendentals=0,
        bytes_accessed=A4 * HW * 4 + A4 * 4 + 2 * num_tiles * 4,
    )

    anchors_flat = pl.pallas_call(
        kernel,
        out_shape=jax.ShapeDtypeStruct((A4, HW), jnp.float32),
        grid_spec=pltpu.PrefetchScalarGridSpec(
            num_scalar_prefetch=2,
            grid=(num_tiles,),
            in_specs=[pl.BlockSpec((A4, 1), lambda t, r0, r1: (0, 0))],
            out_specs=pl.BlockSpec((A4, thw), lambda t, r0, r1: (0, t)),
        ),
        compiler_params=pltpu.CompilerParams(dimension_semantics=("parallel",)),
        cost_estimate=cost,
    )(row0_tab, rem0_tab, offs_flat)

    # contiguous reshape (metadata only) + broadcast over the batch dimension.
    # TODO(synk): if a downstream consumer materializes this broadcast, return
    # the (A4, H, W) slab instead and broadcast inside the consumer.
    anchors_one = anchors_flat.reshape(A4, H, W)
    return jnp.broadcast_to(anchors_one[None], (B, A4, H, W))


def anchors_reference(x, stride):
    """Pure-JAX reference reproducing the PyTorch forward, for verification."""
    B, _, H, W = x.shape
    offs = make_anchor_offsets(stride)
    A = offs.shape[0]
    ygrid, xgrid = jnp.meshgrid(jnp.arange(H) * stride, jnp.arange(W) * stride, indexing="ij")
    one_pixel = jnp.tile(jnp.stack([xgrid, ygrid, xgrid, ygrid]), (A, 1, 1)).astype(jnp.float32)
    anchors_one = one_pixel + jnp.asarray(offs.reshape(A * 4, 1, 1))
    return jnp.broadcast_to(anchors_one[None], (B, A * 4, H, W))


if __name__ == "__main__":
    key = jax.random.PRNGKey(0)
    B, C, H, W = 2, 4, 16, 16
    stride = 4
    x = jax.random.normal(key, (B, C, H, W), dtype=jnp.float32)

    out = jax.block_until_ready(anchors_forward(x, stride))
    ref = anchors_reference(x, stride)
    assert out.shape == (B, 36, H, W)
    assert out.dtype == jnp.float32
    assert np.allclose(np.asarray(out), np.asarray(ref), atol=1e-5)

    # Extra tiny-shape coverage: non-power-of-two W (float row/col path) and a
    # ragged multi-tile HW (cdiv grid + masked tail block).
    for (h2, w2, s2) in ((15, 20, 8), (24, 28, 2)):
        x2 = jax.random.normal(key, (1, 3, h2, w2), dtype=jnp.float32)
        o2 = jax.block_until_ready(anchors_forward(x2, s2))
        r2 = anchors_reference(x2, s2)
        assert np.allclose(np.asarray(o2), np.asarray(r2), atol=1e-5)

    print("KERNEL_OK")
</pallas_src>

<mosaic_0001>
module attributes {stable_mosaic.version = 11 : i64} {
  func.func @kernel(%arg0: i32, %arg1: memref<1xi32, #tpu.memory_space<smem>>, %arg2: memref<1xi32, #tpu.memory_space<smem>>, %arg3: memref<36x1xf32, #tpu.memory_space<vmem>>, %arg4: memref<36x256xf32, #tpu.memory_space<vmem>>) attributes {dimension_semantics = [#tpu.dimension_semantics<parallel>], iteration_bounds = array<i64: 1>, scalar_prefetch = 2 : i64, scratch_operands = 0 : i64, tpu.core_type = #tpu.core_type<tc>, window_params = [{pipeline_mode = #tpu.pipeline_mode<synchronous>, transform_indices = @transform_0, window_bounds = array<i64: 36, 1>}, {transform_indices = @transform_1, window_bounds = array<i64: 36, 256>}]} {
    %0 = arith.index_cast %arg0 : i32 to index
    %1 = memref.load %arg1[%0] : memref<1xi32, #tpu.memory_space<smem>>
    %2 = arith.index_cast %arg0 : i32 to index
    %3 = memref.load %arg2[%2] : memref<1xi32, #tpu.memory_space<smem>>
    %4 = tpu.iota {dimensions = array<i32: 1>} : vector<1x256xi32>
    %5 = vector.broadcast %3 : i32 to vector<1x256xi32>
    %6 = arith.addi %4, %5 : vector<1x256xi32>
    %c4_i32 = arith.constant 4 : i32
    %7 = vector.broadcast %c4_i32 : i32 to vector<1x256xi32>
    %8 = arith.shrsi %6, %7 : vector<1x256xi32>
    %9 = vector.broadcast %1 : i32 to vector<1x256xi32>
    %10 = arith.addi %8, %9 : vector<1x256xi32>
    %11 = arith.sitofp %10 : vector<1x256xi32> to vector<1x256xf32>
    %c15_i32 = arith.constant 15 : i32
    %12 = vector.broadcast %c15_i32 : i32 to vector<1x256xi32>
    %13 = arith.andi %6, %12 : vector<1x256xi32>
    %14 = arith.sitofp %13 : vector<1x256xi32> to vector<1x256xf32>
    %cst = arith.constant 4.000000e+00 : f32
    %15 = vector.broadcast %cst : f32 to vector<1x256xf32>
    %16 = arith.mulf %14, %15 : vector<1x256xf32>
    %cst_0 = arith.constant 4.000000e+00 : f32
    %17 = vector.broadcast %cst_0 : f32 to vector<1x256xf32>
    %18 = arith.mulf %11, %17 : vector<1x256xf32>
    %19 = tpu.iota {dimensions = array<i32: 0>} : vector<36x1xi32>
    %c1_i32 = arith.constant 1 : i32
    %20 = vector.broadcast %c1_i32 : i32 to vector<36x1xi32>
    %21 = arith.andi %19, %20 : vector<36x1xi32>
    %22 = arith.sitofp %21 : vector<36x1xi32> to vector<36x1xf32>
    %23 = arith.subf %18, %16 : vector<1x256xf32>
    %24 = vector.broadcast %22 : vector<36x1xf32> to vector<36x256xf32>
    %25 = vector.broadcast %23 : vector<1x256xf32> to vector<36x256xf32>
    %26 = arith.mulf %24, %25 : vector<36x256xf32>
    %27 = vector.broadcast %16 : vector<1x256xf32> to vector<36x256xf32>
    %28 = arith.addf %27, %26 : vector<36x256xf32>
    %c0 = arith.constant 0 : index
    %c0_1 = arith.constant 0 : index
    %29 = vector.load %arg3[%c0, %c0_1] : memref<36x1xf32, #tpu.memory_space<vmem>>, vector<36x1xf32>
    %30 = vector.broadcast %29 : vector<36x1xf32> to vector<36x256xf32>
    %31 = arith.addf %28, %30 : vector<36x256xf32>
    %c0_2 = arith.constant 0 : index
    %c0_3 = arith.constant 0 : index
    %32 = vector.load %arg4[%c0_2, %c0_3] : memref<36x256xf32, #tpu.memory_space<vmem>>, vector<36x256xf32>
    tpu.vector_store %arg4[%c0_2, %c0_3], %31 {strides = array<i32>} : memref<36x256xf32, #tpu.memory_space<vmem>>, vector<36x256xf32>,
    return
  }
  func.func @transform_0(%arg0: i32, %arg1: memref<1xi32, #tpu.memory_space<smem>>, %arg2: memref<1xi32, #tpu.memory_space<smem>>) -> (i32, i32) {
    %c0_i32 = arith.constant 0 : i32
    %c0_i32_0 = arith.constant 0 : i32
    %c0_i32_1 = arith.constant 0 : i32
    return %c0_i32, %c0_i32_0 : i32, i32
  }
  func.func @transform_1(%arg0: i32, %arg1: memref<1xi32, #tpu.memory_space<smem>>, %arg2: memref<1xi32, #tpu.memory_space<smem>>) -> (i32, i32) {
    %c0_i32 = arith.constant 0 : i32
    %c0_i32_0 = arith.constant 0 : i32
    return %c0_i32, %arg0 : i32, i32
  }
}

</mosaic_0001>

<llo_original>
// kernel: tpu_custom_call.1
$region0: #{tpu_custom_call.1}
  #allocation0 [shape = 'u32[]', space=smem, size = 0x4, offset = 0x4, fixed_abs, tag = 'smem constant byte address 0x4 - core index']
  #allocation1 [shape = 'u32[144,128]{1,0:T(1,128)}', space=vmem, size = 0x12000, scoped, tag = 'internal scratch']
  #allocation2 [shape = 's32[1]{0}', space=sflag, size = 0x4, scoped, tag = 'scoped memory for tpu_custom_call.1']
  #allocation3 [shape = 's32[1]{0:T(128)S(6)}', space=smem, size = 0x200, scoped, tag = 'prefetched SMEM operand 0']
  #allocation4 [shape = 's32[1]{0:T(128)S(6)}', space=smem, size = 0x200, scoped, tag = 'prefetched SMEM operand 1']
  %s0 = inlined_call_operand.<no memory space> [shape: s32[1], index: 0, kind: input, shape index: {}]
  %s1 = inlined_call_operand.<no memory space> [shape: s32[1], index: 1, kind: input, shape index: {}]
  %s2 = inlined_call_operand.vmem [shape: f32[36,1], index: 2, kind: input, shape index: {}]
  %s3 = inlined_call_operand.hbm [shape: f32[36,256], index: 3, kind: output, shape index: {}]
  %s4 = sld [smem:[#allocation0]]
  $region14: #{tpu_custom_call.1} parent=0
    _
  %s6 = ssub.s32 1, %s4
  %s7 = scalar_select 0, %s6, %s4
  %8 = sst [smem:[#allocation3]] %s0
  %9 = sst [smem:[#allocation4]] %s1
  $region1: #{tpu_custom_call.1} parent=0
    #allocation5 [shape = 'u8[40960]{0}', space=vmem, size = 0xa000, scoped, tag = 'output window, operand 0, single buffered']
    #allocation6 [shape = 's32[1]{0}', space=sflag, size = 0x4, scoped, tag = 'scoped memory for tpu_custom_call.1']
    %10 = vsyncpa [#allocation6], 0
    // Predicated region
    $region2: #{tpu_custom_call.1} parent=1 // pred_check
      _
    $region3: #{tpu_custom_call.1} parent=1 // pred_check_branch
      %12 = sbr.rel (0) target = $region5
    $region4: #{tpu_custom_call.1} parent=1 // pred_region
      _
    $region5: #{tpu_custom_call.1} parent=1 // pred_fallthru
      _
    %s13 = sld [smem:[#allocation3]]
    %s14 = sld [smem:[#allocation4]]
    %v15 = vlaneseq
    %v16 = vand.u32 %v15, 127
    %v17 = vadd.s32 %v16, 128
    %v18 = vstv %s14
    %v19 = vadd.s32 %v16, %v18
    %v20 = vadd.s32 %v17, %v18
    %v21 = vshra.s32 %v19, 4
    %v22 = vshra.s32 %v20, 4
    %v23 = vstv %s13
    %v24 = vadd.s32 %v21, %v23
    %v25 = vadd.s32 %v22, %v23
    %v26 = vcvt.s32.f32 %v24
    %v27 = vcvt.s32.f32 %v25
    %v28 = vand.u32 %v19, 15
    %v29 = vand.u32 %v20, 15
    %v30 = vcvt.s32.f32 %v28
    %v31 = vcvt.s32.f32 %v29
    %v32 = vmul.f32 %v30, 4.0
    %v33 = vmul.f32 %v31, 4.0
    %v34 = vmul.f32 %v26, 4.0
    %v35 = vmul.f32 %v27, 4.0
    %v36 = vlaneseq
    %v37 = vshrl.u32 %v36, 7
    %v38 = vadd.s32 %v37, 8
    %v39 = vadd.s32 %v37, 16
    %v40 = vadd.s32 %v37, 24
    %v41 = vadd.s32 %v37, 32
    %v42 = vand.u32 %v37, 1
    %v43 = vand.u32 %v38, 1
    %v44 = vand.u32 %v39, 1
    %v45 = vand.u32 %v40, 1
    %v46 = vand.u32 %v41, 1
    %v47 = vcvt.s32.f32 %v42
    %v48 = vcvt.s32.f32 %v43
    %v49 = vcvt.s32.f32 %v44
    %v50 = vcvt.s32.f32 %v45
    %v51 = vcvt.s32.f32 %v46
    %v52 = vsub.f32 %v34, %v32
    %v53 = vsub.f32 %v35, %v33
    %v54 = vmul.f32 %v47, %v52
    %v55 = vmul.f32 %v47, %v53
    %v56 = vmul.f32 %v48, %v52
    %v57 = vmul.f32 %v48, %v53
    %v58 = vmul.f32 %v49, %v52
    %v59 = vmul.f32 %v49, %v53
    %v60 = vmul.f32 %v50, %v52
    %v61 = vmul.f32 %v50, %v53
    %v62 = vmul.f32 %v51, %v52
    %v63 = vmul.f32 %v51, %v53
    %v64 = vadd.f32 %v32, %v54
    %v65 = vadd.f32 %v33, %v55
    %v66 = vadd.f32 %v32, %v56
    %v67 = vadd.f32 %v33, %v57
    %v68 = vadd.f32 %v32, %v58
    %v69 = vadd.f32 %v33, %v59
    %v70 = vadd.f32 %v32, %v60
    %v71 = vadd.f32 %v33, %v61
    %v72 = vadd.f32 %v32, %v62
    %v73 = vadd.f32 %v33, %v63
    %v74 = vld [vmem:[%s2] sm:$0xff]
    %v75 = vld [vmem:[%s2 + $0x8] sm:$0xff]
    %v76 = vld [vmem:[%s2 + $0x10] sm:$0xff]
    %v77 = vld [vmem:[%s2 + $0x18] sm:$0xff]
    %v78 = vld [vmem:[%s2 + $0x20] sm:$0xf]
    %80 = vset.pattern.permute.xlu0 0
    %81 = vperm.xlu0 %80, %v74
    %v82 = vpop.permute.xlu0 %81
    %85 = vset.pattern.permute.xlu0 0
    %86 = vperm.xlu0 %85, %v75
    %v87 = vpop.permute.xlu0 %86
    %90 = vset.pattern.permute.xlu0 0
    %91 = vperm.xlu0 %90, %v76
    %v92 = vpop.permute.xlu0 %91
    %95 = vset.pattern.permute.xlu0 0
    %96 = vperm.xlu0 %95, %v77
    %v97 = vpop.permute.xlu0 %96
    %100 = vset.pattern.permute.xlu0 0
    %101 = vperm.xlu0 %100, %v78
    %v102 = vpop.permute.xlu0 %101
    %v104 = vadd.f32 %v64, %v82
    %v105 = vadd.f32 %v65, %v82
    %v106 = vadd.f32 %v66, %v87
    %v107 = vadd.f32 %v67, %v87
    %v108 = vadd.f32 %v68, %v92
    %v109 = vadd.f32 %v69, %v92
    %v110 = vadd.f32 %v70, %v97
    %v111 = vadd.f32 %v71, %v97
    %v112 = vadd.f32 %v72, %v102
    %v113 = vadd.f32 %v73, %v102
    %114 = vst [vmem:[#allocation5] sm:$0xff] %v104
    %115 = vst [vmem:[#allocation5 + $0x8] sm:$0xff] %v105
    %116 = vst [vmem:[#allocation5 + $0x10] sm:$0xff] %v106
    %117 = vst [vmem:[#allocation5 + $0x18] sm:$0xff] %v107
    %118 = vst [vmem:[#allocation5 + $0x20] sm:$0xff] %v108
    %119 = vst [vmem:[#allocation5 + $0x28] sm:$0xff] %v109
    %120 = vst [vmem:[#allocation5 + $0x30] sm:$0xff] %v110
    %121 = vst [vmem:[#allocation5 + $0x38] sm:$0xff] %v111
    %122 = vst [vmem:[#allocation5 + $0x40] sm:$0xf] %v112
    %123 = vst [vmem:[#allocation5 + $0x48] sm:$0xf] %v113
    // Predicated region
    $region6: #{tpu_custom_call.1} parent=1 // pred_check
      _
    $region7: #{tpu_custom_call.1} parent=1 // pred_check_branch
      %125 = sbr.rel (0) target = $region9
    $region8: #{tpu_custom_call.1} parent=1 // pred_region
      %s127 = ssub.s32 1280, 1280
      %128 = vsyncadd [#allocation6], %s127
      %s129 = sshll.u32 [#allocation5], 4
      %s130 = int_to_ptr.vmem [resolvable:$true] %s129
      %135 = dma.vmem_to_hbm [thread:$0]  %s130, 1280, %s3, [#allocation6], 256, 256, 16
    $region9: #{tpu_custom_call.1} parent=1 // pred_fallthru
      _
    // Predicated region
    $region10: #{tpu_custom_call.1} parent=1 // pred_check
      _
    $region11: #{tpu_custom_call.1} parent=1 // pred_check_branch
      %137 = sbr.rel (0) target = $region13
    $region12: #{tpu_custom_call.1} parent=1 // pred_region
      %138 = dma.done [#allocation6], 1280
    $region13: #{tpu_custom_call.1} parent=1 // pred_fallthru
      _
    %139 = vsyncpa [#allocation6], 1

</llo_original>
